<compile_context>
chip_gen: v6e
topology: v6e:2x2x1
jax: 0.10.0
libtpu: 0.0.40
codegen_flags: <defaults>
</compile_context>

<pallas_src>
import jax
import jax.numpy as jnp
from jax.experimental import pallas as pl
from jax.experimental.pallas import tpu as pltpu

# ---- small config consistent with the module's constructor ----
VOCAB_SIZE = 512      # stands in for 50000
D_MODEL    = 32       # stands in for 512
NHEAD      = 4        # stands in for 8
NUM_LAYERS = 2        # stands in for 6
DIM_FF     = 64       # stands in for 2048
MAX_SEQ    = 64       # stands in for 1000
NUM_USERS  = 128      # stands in for 100000
LN_EPS     = 1e-5
_INV_SQRT2 = 0.7071067811865476

N_HEADS_OUT = VOCAB_SIZE + 5 + 1 + 1 + 1                      # fused head width
N_HEADS_PAD = ((N_HEADS_OUT + 127) // 128) * 128              # lane-dense pad


# ------------------------------------------------------------------ tiling helpers
def _pick_row_tile(m, cap=512):
    for t in (cap, 256, 128, 64, 32, 16, 8):
        if t <= m and m % t == 0:
            return t
    return m


def _pick_col_tile(n, cap=2048):
    if n % 128 != 0:
        return n
    t = min(cap, n)
    t -= t % 128
    while n % t != 0:
        t -= 128
    return t


# ------------------------------------------------------------------ kernels
def _personalize_kernel(c_ref, u_ref, wc_ref, wu_ref, b_ref, o_ref):
    # [combined, user] @ W  ==  combined @ W_top + user @ W_bot
    y = (jnp.dot(c_ref[...], wc_ref[...], preferred_element_type=jnp.float32)
         + jnp.dot(u_ref[...], wu_ref[...], preferred_element_type=jnp.float32)
         + b_ref[...].astype(jnp.float32))
    o_ref[...] = y.astype(o_ref.dtype)


def _attn_block_kernel(x_ref, wqkv_ref, bqkv_ref, wout_ref, bout_ref,
                       g_ref, beta_ref, o_ref):
    # Fused: QKV proj -> per-head softmax attention -> out proj -> Add&LN.
    x = x_ref[0]                                   # (S, D) bf16
    S, D = x.shape
    H = NHEAD
    Dh = D // H
    scale = 1.0 / float(Dh) ** 0.5

    qkv = jnp.dot(x, wqkv_ref[...], preferred_element_type=jnp.float32)
    qkv = qkv + bqkv_ref[...].astype(jnp.float32)  # (S, 3D) f32

    w_out = wout_ref[...]                          # (D, D) bf16
    attn_out = jnp.broadcast_to(bout_ref[...].astype(jnp.float32), (S, D))

    for h in range(H):                             # static head loop, stays in VMEM
        q = qkv[:, h * Dh:(h + 1) * Dh].astype(jnp.bfloat16)
        k = qkv[:, D + h * Dh:D + (h + 1) * Dh].astype(jnp.bfloat16)
        v = qkv[:, 2 * D + h * Dh:2 * D + (h + 1) * Dh].astype(jnp.bfloat16)
        s = jnp.dot(q, k.T, preferred_element_type=jnp.float32) * scale
        s = s - jnp.max(s, axis=-1, keepdims=True)
        p = jnp.exp(s)
        p = p * pl.reciprocal(jnp.sum(p, axis=-1, keepdims=True), approx=True)
        attn_h = jnp.dot(p.astype(jnp.bfloat16), v,
                         preferred_element_type=jnp.float32)       # (S, Dh)
        # concat_h(attn_h) @ W_out  ==  sum_h attn_h @ W_out[h*Dh:(h+1)*Dh, :]
        attn_out = attn_out + jnp.dot(attn_h.astype(jnp.bfloat16),
                                      w_out[h * Dh:(h + 1) * Dh, :],
                                      preferred_element_type=jnp.float32)

    # post-norm residual: LayerNorm(x + SA(x)), f32 math
    y = x.astype(jnp.float32) + attn_out
    mean = jnp.mean(y, axis=-1, keepdims=True)
    var = jnp.mean(jnp.square(y - mean), axis=-1, keepdims=True)
    y = (y - mean) * jax.lax.rsqrt(var + LN_EPS)
    y = y * g_ref[...].astype(jnp.float32) + beta_ref[...].astype(jnp.float32)
    o_ref[0] = y.astype(o_ref.dtype)


def _ffn_block_kernel(x_ref, w1_ref, b1_ref, w2_ref, b2_ref, g_ref, beta_ref, o_ref):
    # Fused: linear1 -> exact GELU -> linear2 -> Add&LN (dropout = identity).
    x = x_ref[...]                                 # (tm, D) bf16
    h = jnp.dot(x, w1_ref[...], preferred_element_type=jnp.float32)
    h = h + b1_ref[...].astype(jnp.float32)
    h = 0.5 * h * (1.0 + jax.lax.erf(h * _INV_SQRT2))
    y = jnp.dot(h.astype(jnp.bfloat16), w2_ref[...],
                preferred_element_type=jnp.float32)
    y = y + b2_ref[...].astype(jnp.float32)
    y = x.astype(jnp.float32) + y
    mean = jnp.mean(y, axis=-1, keepdims=True)
    var = jnp.mean(jnp.square(y - mean), axis=-1, keepdims=True)
    y = (y - mean) * jax.lax.rsqrt(var + LN_EPS)
    y = y * g_ref[...].astype(jnp.float32) + beta_ref[...].astype(jnp.float32)
    o_ref[...] = y.astype(o_ref.dtype)


def _heads_kernel(x_ref, w_ref, b_ref, o_ref):
    # Fused (vocab + difficulty + engagement + time + mastery) projection,
    # lane-dense output tile (tm, tn).
    o_ref[...] = (jnp.dot(x_ref[...], w_ref[...],
                          preferred_element_type=jnp.float32)
                  + b_ref[...].astype(jnp.float32)).astype(o_ref.dtype)


# ------------------------------------------------------------------ wrappers
def personalize(c2d, u2d, w_c, w_u, b):
    M, D = c2d.shape
    tm = _pick_row_tile(M)
    return pl.pallas_call(
        _personalize_kernel,
        out_shape=jax.ShapeDtypeStruct((M, D), jnp.bfloat16),
        grid=(M // tm,),
        in_specs=[
            pl.BlockSpec((tm, D), lambda i: (i, 0)),
            pl.BlockSpec((tm, D), lambda i: (i, 0)),
            pl.BlockSpec((D, D), lambda i: (0, 0)),
            pl.BlockSpec((D, D), lambda i: (0, 0)),
            pl.BlockSpec((1, D), lambda i: (0, 0)),
        ],
        out_specs=pl.BlockSpec((tm, D), lambda i: (i, 0)),
        compiler_params=pltpu.CompilerParams(dimension_semantics=("parallel",)),
    )(c2d, u2d, w_c, w_u, b)


def attention_block(x, lp):
    B, S, D = x.shape
    return pl.pallas_call(
        _attn_block_kernel,
        out_shape=jax.ShapeDtypeStruct((B, S, D), jnp.bfloat16),
        grid=(B,),
        in_specs=[
            pl.BlockSpec((1, S, D), lambda b: (b, 0, 0)),
            pl.BlockSpec((D, 3 * D), lambda b: (0, 0)),
            pl.BlockSpec((1, 3 * D), lambda b: (0, 0)),
            pl.BlockSpec((D, D), lambda b: (0, 0)),
            pl.BlockSpec((1, D), lambda b: (0, 0)),
            pl.BlockSpec((1, D), lambda b: (0, 0)),
            pl.BlockSpec((1, D), lambda b: (0, 0)),
        ],
        out_specs=pl.BlockSpec((1, S, D), lambda b: (b, 0, 0)),
        compiler_params=pltpu.CompilerParams(dimension_semantics=("parallel",)),
    )(x, lp['w_qkv'], lp['b_qkv'], lp['w_out'], lp['b_out'],
      lp['ln1_g'], lp['ln1_b'])
    # TODO(synk): at the real scale (S=1000) switch the per-head score matmul
    # to a flash-style online softmax over KV tiles to bound VMEM on v7x.


def ffn_block(x2d, lp):
    M, D = x2d.shape
    F = lp['w_ff1'].shape[1]
    tm = _pick_row_tile(M)
    return pl.pallas_call(
        _ffn_block_kernel,
        out_shape=jax.ShapeDtypeStruct((M, D), jnp.bfloat16),
        grid=(M // tm,),
        in_specs=[
            pl.BlockSpec((tm, D), lambda i: (i, 0)),
            pl.BlockSpec((D, F), lambda i: (0, 0)),
            pl.BlockSpec((1, F), lambda i: (0, 0)),
            pl.BlockSpec((F, D), lambda i: (0, 0)),
            pl.BlockSpec((1, D), lambda i: (0, 0)),
            pl.BlockSpec((1, D), lambda i: (0, 0)),
            pl.BlockSpec((1, D), lambda i: (0, 0)),
        ],
        out_specs=pl.BlockSpec((tm, D), lambda i: (i, 0)),
        compiler_params=pltpu.CompilerParams(dimension_semantics=("parallel",)),
    )(x2d, lp['w_ff1'], lp['b_ff1'], lp['w_ff2'], lp['b_ff2'],
      lp['ln2_g'], lp['ln2_b'])


def fused_heads(x2d, w, b):
    M, D = x2d.shape
    N = w.shape[1]
    tm = _pick_row_tile(M)
    tn = _pick_col_tile(N)
    return pl.pallas_call(
        _heads_kernel,
        out_shape=jax.ShapeDtypeStruct((M, N), jnp.float32),
        grid=(M // tm, N // tn),
        in_specs=[
            pl.BlockSpec((tm, D), lambda i, j: (i, 0)),
            pl.BlockSpec((D, tn), lambda i, j: (0, j)),
            pl.BlockSpec((1, tn), lambda i, j: (0, j)),
        ],
        out_specs=pl.BlockSpec((tm, tn), lambda i, j: (i, j)),
        compiler_params=pltpu.CompilerParams(
            dimension_semantics=("parallel", "parallel")),
    )(x2d, w, b)


# ------------------------------------------------------------------ model
def init_params(key):
    keys = iter(jax.random.split(key, 64))

    def nrm(shape, scale=0.02):
        return (scale * jax.random.normal(next(keys), shape)).astype(jnp.bfloat16)

    def zeros(shape):
        return jnp.zeros(shape, jnp.bfloat16)

    D = D_MODEL

    # fused output heads: [path (V) | difficulty (5) | engagement | time | mastery]
    w_heads = jnp.concatenate(
        [nrm((D, VOCAB_SIZE)), nrm((D, 5)), nrm((D, 1)), nrm((D, 1)), nrm((D, 1))],
        axis=1)
    w_heads = jnp.pad(w_heads, ((0, 0), (0, N_HEADS_PAD - N_HEADS_OUT)))
    b_heads = jnp.zeros((1, N_HEADS_PAD), jnp.bfloat16)

    params = {
        'concept_emb': nrm((VOCAB_SIZE, D)),
        'pos_emb':     nrm((MAX_SEQ, D)),
        'diff_emb':    nrm((5, D)),
        'user_emb':    nrm((NUM_USERS, D)),
        # personalization linear split into its two halves (concat-free kernel)
        'pers_w_c': nrm((D, D)), 'pers_w_u': nrm((D, D)), 'pers_b': zeros((1, D)),
        'w_heads': w_heads, 'b_heads': b_heads,
        'layers': [],
    }
    for _ in range(NUM_LAYERS):
        params['layers'].append({
            'w_qkv': nrm((D, 3 * D)), 'b_qkv': zeros((1, 3 * D)),
            'w_out': nrm((D, D)),     'b_out': zeros((1, D)),
            'ln1_g': jnp.ones((1, D), jnp.bfloat16), 'ln1_b': zeros((1, D)),
            'w_ff1': nrm((D, DIM_FF)), 'b_ff1': zeros((1, DIM_FF)),
            'w_ff2': nrm((DIM_FF, D)), 'b_ff2': zeros((1, D)),
            'ln2_g': jnp.ones((1, D), jnp.bfloat16), 'ln2_b': zeros((1, D)),
        })
    return params


def forward(params, concept_ids, user_id, difficulty_levels, position_ids,
            knowledge_graph_features=None):
    B, S = concept_ids.shape
    D = D_MODEL
    M = B * S

    # embedding gathers (glue)
    concept_emb = jnp.take(params['concept_emb'], concept_ids, axis=0)
    position_emb = jnp.take(params['pos_emb'], position_ids, axis=0)
    difficulty_emb = jnp.take(params['diff_emb'], difficulty_levels, axis=0)
    user_emb = jnp.take(params['user_emb'], user_id, axis=0)[:, None, :]
    user_emb = jnp.broadcast_to(user_emb, (B, S, D))

    combined = (concept_emb.astype(jnp.float32) + position_emb.astype(jnp.float32)
                + difficulty_emb.astype(jnp.float32)).astype(jnp.bfloat16)

    x2 = personalize(combined.reshape(M, D), user_emb.reshape(M, D),
                     params['pers_w_c'], params['pers_w_u'], params['pers_b'])
    x = x2.reshape(B, S, D)

    # TODO(synk): optional knowledge_graph_attention cross-attention branch
    # (knowledge_graph_features is None on this forward path).

    for lp in params['layers']:
        x = attention_block(x, lp)                              # fused SA block
        x = ffn_block(x.reshape(M, D), lp).reshape(B, S, D)     # fused FFN block

    h2d = x.reshape(M, D)
    heads = fused_heads(h2d, params['w_heads'], params['b_heads'])  # (M, N_pad) f32

    next_concepts   = heads[:, :VOCAB_SIZE].reshape(B, S, VOCAB_SIZE)
    difficulty_pred = heads[:, VOCAB_SIZE:VOCAB_SIZE + 5].reshape(B, S, 5)
    engagement_pred = heads[:, VOCAB_SIZE + 5:VOCAB_SIZE + 6].reshape(B, S, 1)
    time_pred       = heads[:, VOCAB_SIZE + 6:VOCAB_SIZE + 7].reshape(B, S, 1)
    mastery_pred    = heads[:, VOCAB_SIZE + 7:VOCAB_SIZE + 8].reshape(B, S, 1)

    return {
        'next_concepts': next_concepts,
        'difficulty_prediction': difficulty_pred,
        'engagement_prediction': engagement_pred,
        'time_prediction': time_pred,
        'mastery_prediction': mastery_pred,
        'hidden_states': x,
    }


# ------------------------------------------------------------------ main
if __name__ == "__main__":
    key = jax.random.PRNGKey(0)
    pkey, k1, k2, k3 = jax.random.split(key, 4)
    params = init_params(pkey)

    B, S = 2, 8
    concept_ids = jax.random.randint(k1, (B, S), 0, VOCAB_SIZE, dtype=jnp.int32)
    user_id = jax.random.randint(k2, (B,), 0, NUM_USERS, dtype=jnp.int32)
    difficulty_levels = jax.random.randint(k3, (B, S), 0, 5, dtype=jnp.int32)
    position_ids = jnp.broadcast_to(jnp.arange(S, dtype=jnp.int32), (B, S))

    out = forward(params, concept_ids, user_id, difficulty_levels, position_ids)
    out = jax.block_until_ready(out)

    assert out['next_concepts'].shape == (B, S, VOCAB_SIZE)
    assert out['difficulty_prediction'].shape == (B, S, 5)
    assert out['engagement_prediction'].shape == (B, S, 1)
    assert out['time_prediction'].shape == (B, S, 1)
    assert out['mastery_prediction'].shape == (B, S, 1)
    assert out['hidden_states'].shape == (B, S, D_MODEL)
    assert all(bool(jnp.all(jnp.isfinite(v.astype(jnp.float32)))) for v in out.values())

    print("KERNEL_OK")
</pallas_src>

<mosaic_0001>
module attributes {stable_mosaic.version = 11 : i64} {
  func.func @_personalize_kernel(%arg0: i32, %arg1: memref<16x32xbf16, #tpu.memory_space<vmem>>, %arg2: memref<16x32xbf16, #tpu.memory_space<vmem>>, %arg3: memref<32x32xbf16, #tpu.memory_space<vmem>>, %arg4: memref<32x32xbf16, #tpu.memory_space<vmem>>, %arg5: memref<1x32xbf16, #tpu.memory_space<vmem>>, %arg6: memref<16x32xbf16, #tpu.memory_space<vmem>>) attributes {dimension_semantics = [#tpu.dimension_semantics<parallel>], iteration_bounds = array<i64: 1>, scalar_prefetch = 0 : i64, scratch_operands = 0 : i64, tpu.core_type = #tpu.core_type<tc>, window_params = [{transform_indices = @transform_0, window_bounds = array<i64: 16, 32>}, {transform_indices = @transform_1, window_bounds = array<i64: 16, 32>}, {pipeline_mode = #tpu.pipeline_mode<synchronous>, transform_indices = @transform_2, window_bounds = array<i64: 32, 32>}, {pipeline_mode = #tpu.pipeline_mode<synchronous>, transform_indices = @transform_3, window_bounds = array<i64: 32, 32>}, {pipeline_mode = #tpu.pipeline_mode<synchronous>, transform_indices = @transform_4, window_bounds = array<i64: 1, 32>}, {transform_indices = @transform_5, window_bounds = array<i64: 16, 32>}]} {
    %c0 = arith.constant 0 : index
    %c0_0 = arith.constant 0 : index
    %0 = vector.load %arg1[%c0, %c0_0] : memref<16x32xbf16, #tpu.memory_space<vmem>>, vector<16x32xbf16>
    %c0_1 = arith.constant 0 : index
    %c0_2 = arith.constant 0 : index
    %1 = vector.load %arg3[%c0_1, %c0_2] : memref<32x32xbf16, #tpu.memory_space<vmem>>, vector<32x32xbf16>
    %cst = arith.constant dense<0.000000e+00> : vector<16x32xf32>
    %2 = tpu.matmul %0, %1, %cst {dimension_numbers = #tpu.dot_dimension_numbers<[1], [0], [0], [1], [0, 0, 1, 1], [], []>} : vector<16x32xbf16>, vector<32x32xbf16>, vector<16x32xf32> -> vector<16x32xf32>
    %c0_3 = arith.constant 0 : index
    %c0_4 = arith.constant 0 : index
    %3 = vector.load %arg2[%c0_3, %c0_4] : memref<16x32xbf16, #tpu.memory_space<vmem>>, vector<16x32xbf16>
    %c0_5 = arith.constant 0 : index
    %c0_6 = arith.constant 0 : index
    %4 = vector.load %arg4[%c0_5, %c0_6] : memref<32x32xbf16, #tpu.memory_space<vmem>>, vector<32x32xbf16>
    %cst_7 = arith.constant dense<0.000000e+00> : vector<16x32xf32>
    %5 = tpu.matmul %3, %4, %cst_7 {dimension_numbers = #tpu.dot_dimension_numbers<[1], [0], [0], [1], [0, 0, 1, 1], [], []>} : vector<16x32xbf16>, vector<32x32xbf16>, vector<16x32xf32> -> vector<16x32xf32>
    %6 = arith.addf %2, %5 : vector<16x32xf32>
    %c0_8 = arith.constant 0 : index
    %c0_9 = arith.constant 0 : index
    %7 = vector.load %arg5[%c0_8, %c0_9] : memref<1x32xbf16, #tpu.memory_space<vmem>>, vector<1x32xbf16>
    %8 = arith.extf %7 : vector<1x32xbf16> to vector<1x32xf32>
    %9 = vector.broadcast %8 : vector<1x32xf32> to vector<16x32xf32>
    %10 = arith.addf %6, %9 : vector<16x32xf32>
    %11 = arith.truncf %10 : vector<16x32xf32> to vector<16x32xbf16>
    %c0_10 = arith.constant 0 : index
    %c0_11 = arith.constant 0 : index
    %12 = vector.load %arg6[%c0_10, %c0_11] : memref<16x32xbf16, #tpu.memory_space<vmem>>, vector<16x32xbf16>
    tpu.vector_store %arg6[%c0_10, %c0_11], %11 {strides = array<i32>} : memref<16x32xbf16, #tpu.memory_space<vmem>>, vector<16x32xbf16>,
    return
  }
  func.func @transform_0(%arg0: i32) -> (i32, i32) {
    %c0_i32 = arith.constant 0 : i32
    %c0_i32_0 = arith.constant 0 : i32
    return %arg0, %c0_i32 : i32, i32
  }
  func.func @transform_1(%arg0: i32) -> (i32, i32) {
    %c0_i32 = arith.constant 0 : i32
    %c0_i32_0 = arith.constant 0 : i32
    return %arg0, %c0_i32 : i32, i32
  }
  func.func @transform_2(%arg0: i32) -> (i32, i32) {
    %c0_i32 = arith.constant 0 : i32
    %c0_i32_0 = arith.constant 0 : i32
    %c0_i32_1 = arith.constant 0 : i32
    return %c0_i32, %c0_i32_0 : i32, i32
  }
  func.func @transform_3(%arg0: i32) -> (i32, i32) {
    %c0_i32 = arith.constant 0 : i32
    %c0_i32_0 = arith.constant 0 : i32
    %c0_i32_1 = arith.constant 0 : i32
    return %c0_i32, %c0_i32_0 : i32, i32
  }
  func.func @transform_4(%arg0: i32) -> (i32, i32) {
    %c0_i32 = arith.constant 0 : i32
    %c0_i32_0 = arith.constant 0 : i32
    %c0_i32_1 = arith.constant 0 : i32
    return %c0_i32, %c0_i32_0 : i32, i32
  }
  func.func @transform_5(%arg0: i32) -> (i32, i32) {
    %c0_i32 = arith.constant 0 : i32
    %c0_i32_0 = arith.constant 0 : i32
    return %arg0, %c0_i32 : i32, i32
  }
}

</mosaic_0001>

<llo_original>
// kernel: tpu_custom_call.1
$region0: #{tpu_custom_call.1}
  #allocation0 [shape = 'u32[]', space=smem, size = 0x4, offset = 0x4, fixed_abs, tag = 'smem constant byte address 0x4 - core index']
  #allocation1 [shape = 'u32[144,128]{1,0:T(1,128)}', space=vmem, size = 0x12000, scoped, tag = 'internal scratch']
  %s0 = inlined_call_operand.hbm [shape: bf16[16,32], index: 0, kind: input, shape index: {}]
  %s1 = inlined_call_operand.hbm [shape: bf16[16,32], index: 1, kind: input, shape index: {}]
  %s2 = inlined_call_operand.hbm [shape: bf16[32,32], index: 2, kind: input, shape index: {}]
  %s3 = inlined_call_operand.hbm [shape: bf16[32,32], index: 3, kind: input, shape index: {}]
  %s4 = inlined_call_operand.vmem [shape: bf16[1,32], index: 4, kind: input, shape index: {}]
  %s5 = inlined_call_operand.hbm [shape: bf16[16,32], index: 5, kind: output, shape index: {}]
  %s6 = sld [smem:[#allocation0]]
  $region46: #{tpu_custom_call.1} parent=0
    _
  %s8 = ssub.s32 1, %s6
  %s9 = scalar_select 0, %s8, %s6
  $region1: #{tpu_custom_call.1} parent=0
    #allocation2 [shape = 'u8[4096]{0}', space=vmem, size = 0x1000, scoped, tag = 'input window, operand 0, single buffered']
    #allocation3 [shape = 's32[1]{0}', space=sflag, size = 0x4, scoped, tag = 'scoped memory for tpu_custom_call.1']
    #allocation4 [shape = 's32[1]{0}', space=sflag, size = 0x4, scoped, tag = 'scoped memory for tpu_custom_call.1']
    #allocation5 [shape = 'u8[4096]{0}', space=vmem, size = 0x1000, scoped, tag = 'input window, operand 1, single buffered']
    #allocation6 [shape = 's32[1]{0}', space=sflag, size = 0x4, scoped, tag = 'scoped memory for tpu_custom_call.1']
    #allocation7 [shape = 'u8[8192]{0}', space=vmem, size = 0x2000, scoped, tag = 'input window, operand 2, single buffered']
    #allocation8 [shape = 'u8[8192]{0}', space=vmem, size = 0x2000, scoped, tag = 'input window, operand 3, single buffered']
    #allocation9 [shape = 's32[1]{0}', space=sflag, size = 0x4, scoped, tag = 'scoped memory for tpu_custom_call.1']
    #allocation10 [shape = 'u8[4096]{0}', space=vmem, size = 0x1000, scoped, tag = 'output window, operand 0, single buffered']
    %10 = vsyncpa [#allocation3], 0
    %11 = vsyncpa [#allocation6], 0
    %12 = vsyncpa [#allocation9], 0
    %13 = vsyncpa [#allocation4], 0
    // Predicated region
    $region2: #{tpu_custom_call.1} parent=1 // pred_check
      _
    $region3: #{tpu_custom_call.1} parent=1 // pred_check_branch
      %15 = sbr.rel (0) target = $region5
    $region4: #{tpu_custom_call.1} parent=1 // pred_region
      %s17 = ssub.s32 128, 128
      %18 = vsyncadd [#allocation3], %s17
      %s19 = sshll.u32 [#allocation2], 4
      %s20 = int_to_ptr.vmem [resolvable:$true] %s19
      %25 = dma.hbm_to_vmem [thread:$0]  %s0, 128, %s20, [#allocation3], 64, 64, 4
    $region5: #{tpu_custom_call.1} parent=1 // pred_fallthru
      _
    // Predicated region
    $region6: #{tpu_custom_call.1} parent=1 // pred_check
      _
    $region7: #{tpu_custom_call.1} parent=1 // pred_check_branch
      %27 = sbr.rel (0) target = $region9
    $region8: #{tpu_custom_call.1} parent=1 // pred_region
      %s29 = ssub.s32 128, 128
      %30 = vsyncadd [#allocation6], %s29
      %s31 = sshll.u32 [#allocation5], 4
      %s32 = int_to_ptr.vmem [resolvable:$true] %s31
      %37 = dma.hbm_to_vmem [thread:$0]  %s1, 128, %s32, [#allocation6], 64, 64, 4
    $region9: #{tpu_custom_call.1} parent=1 // pred_fallthru
      _
    // Predicated region
    $region10: #{tpu_custom_call.1} parent=1 // pred_check
      _
    $region11: #{tpu_custom_call.1} parent=1 // pred_check_branch
      %39 = sbr.rel (0) target = $region13
    $region12: #{tpu_custom_call.1} parent=1 // pred_region
      %s41 = ssub.s32 256, 256
      %42 = vsyncadd [#allocation6], %s41
      %s43 = sshll.u32 [#allocation7], 4
      %s44 = int_to_ptr.vmem [resolvable:$true] %s43
      %49 = dma.hbm_to_vmem [thread:$0]  %s2, 256, %s44, [#allocation6], 64, 64, 4
    $region13: #{tpu_custom_call.1} parent=1 // pred_fallthru
      _
    // Predicated region
    $region14: #{tpu_custom_call.1} parent=1 // pred_check
      _
    $region15: #{tpu_custom_call.1} parent=1 // pred_check_branch
      %51 = sbr.rel (0) target = $region17
    $region16: #{tpu_custom_call.1} parent=1 // pred_region
      %s53 = ssub.s32 256, 256
      %54 = vsyncadd [#allocation9], %s53
      %s55 = sshll.u32 [#allocation8], 4
      %s56 = int_to_ptr.vmem [resolvable:$true] %s55
      %61 = dma.hbm_to_vmem [thread:$0]  %s3, 256, %s56, [#allocation9], 64, 64, 4
    $region17: #{tpu_custom_call.1} parent=1 // pred_fallthru
      _
    // Predicated region
    $region18: #{tpu_custom_call.1} parent=1 // pred_check
      _
    $region19: #{tpu_custom_call.1} parent=1 // pred_check_branch
      %63 = sbr.rel (0) target = $region21
    $region20: #{tpu_custom_call.1} parent=1 // pred_region
      _
    $region21: #{tpu_custom_call.1} parent=1 // pred_fallthru
      _
    // Predicated region
    $region22: #{tpu_custom_call.1} parent=1 // pred_check
      _
    $region23: #{tpu_custom_call.1} parent=1 // pred_check_branch
      %65 = sbr.rel (0) target = $region25
    $region24: #{tpu_custom_call.1} parent=1 // pred_region
      %66 = dma.done [#allocation3], 128
    $region25: #{tpu_custom_call.1} parent=1 // pred_fallthru
      _
    // Predicated region
    $region26: #{tpu_custom_call.1} parent=1 // pred_check
      _
    $region27: #{tpu_custom_call.1} parent=1 // pred_check_branch
      %68 = sbr.rel (0) target = $region29
    $region28: #{tpu_custom_call.1} parent=1 // pred_region
      %69 = dma.done [#allocation6], 128
    $region29: #{tpu_custom_call.1} parent=1 // pred_fallthru
      _
    // Predicated region
    $region30: #{tpu_custom_call.1} parent=1 // pred_check
      _
    $region31: #{tpu_custom_call.1} parent=1 // pred_check_branch
      %71 = sbr.rel (0) target = $region33
    $region32: #{tpu_custom_call.1} parent=1 // pred_region
      %72 = dma.done [#allocation6], 256
    $region33: #{tpu_custom_call.1} parent=1 // pred_fallthru
      _
    // Predicated region
    $region34: #{tpu_custom_call.1} parent=1 // pred_check
      _
    $region35: #{tpu_custom_call.1} parent=1 // pred_check_branch
      %74 = sbr.rel (0) target = $region37
    $region36: #{tpu_custom_call.1} parent=1 // pred_region
      %75 = dma.done [#allocation9], 256
    $region37: #{tpu_custom_call.1} parent=1 // pred_fallthru
      _
    %v77 = vld [vmem:[#allocation2] sm:$0xf]
    %v78 = vld [vmem:[#allocation2 + $0x4] sm:$0xf]
    %v79 = vld [vmem:[#allocation7] sm:$0xf]
    %v80 = vld [vmem:[#allocation7 + $0x4] sm:$0xf]
    %v81 = vld [vmem:[#allocation7 + $0x8] sm:$0xf]
    %v82 = vld [vmem:[#allocation7 + $0xc] sm:$0xf]
    %v83 = vld [vmem:[#allocation5] sm:$0xf]
    %v84 = vld [vmem:[#allocation5 + $0x4] sm:$0xf]
    %v85 = vld [vmem:[#allocation8] sm:$0xf]
    %v86 = vld [vmem:[#allocation8 + $0x4] sm:$0xf]
    %v87 = vld [vmem:[#allocation8 + $0x8] sm:$0xf]
    %v88 = vld [vmem:[#allocation8 + $0xc] sm:$0xf]
    %v91 = vunpack.c.l.b16 %v83
    %v92 = vunpack.c.l.b16 %v84
    %v93 = vpack.c.b16 %v92, %v91
    %v98 = vunpack.c.l.b16 %v85
    %v99 = vunpack.c.l.b16 %v86
    %v100 = vunpack.c.l.b16 %v87
    %v101 = vunpack.c.l.b16 %v88
    %v102 = vpack.c.b16 %v99, %v98
    %v103 = vpack.c.b16 %v101, %v100
    %vm106 = vcmask 261120
    %v108 = vsel %vm106, %v93, 0
    %110 = vmatprep.subr.bf16.mxu0 0
    %111 = vmatpush1.bf16.msra.mxu0 0
    %112 = vmatprep.subr.bf16.mxu0 0
    %113 = vmatpush1.bf16.msra.mxu0 0
    %114 = vmatprep.subr.bf16.mxu0 0
    %115 = vmatpush1.bf16.msra.mxu0 0
    %116 = vmatprep.subr.bf16.mxu0 0
    %117 = vmatpush1.bf16.msra.mxu0 0
    %118 = vmatprep.subr.bf16.mxu0 0
    %119 = vmatpush1.bf16.msra.mxu0 0
    %120 = vmatprep.subr.bf16.mxu0 0
    %121 = vmatpush1.bf16.msra.mxu0 0
    %122 = vmatprep.subr.bf16.mxu0 0
    %123 = vmatpush1.bf16.msra.mxu0 %v103
    %124 = vmatprep.subr.bf16.mxu0 0
    %125 = vmatpush1.bf16.msra.mxu0 %v102
    %126 = vmatprep.subr.bf16.mxu0 0
    %127 = vmatpush2.bf16.msra.mxu0 0
    %128 = vmatprep.subr.bf16.mxu0 0
    %129 = vmatpush2.bf16.msra.mxu0 0
    %130 = vmatprep.subr.bf16.mxu0 0
    %131 = vmatpush2.bf16.msra.mxu0 0
    %132 = vmatprep.subr.bf16.mxu0 0
    %133 = vmatpush2.bf16.msra.mxu0 0
    %134 = vmatprep.subr.bf16.mxu0 0
    %135 = vmatpush2.bf16.msra.mxu0 0
    %136 = vmatprep.subr.bf16.mxu0 0
    %137 = vmatpush2.bf16.msra.mxu0 0
    %138 = vmatprep.subr.bf16.mxu0 0
    %139 = vmatpush2.bf16.msra.mxu0 0
    %140 = vmatprep.subr.bf16.mxu0 0
    %141 = vmatpush2.bf16.msra.mxu0 0
    %142 = vmatprep.mubr.bf16.mxu0 0
    %143 = vmatmul.mubr.bf16.gmra.mxu0 %v108
    %v144 = vpop.f32.mrf.mxu0
    %v145 = vadd.f32 0.0, %v144
    %v146 = vpop.f32.mrf.mxu0
    %v147 = vpop.f32.mrf.mxu0
    %v148 = vadd.f32 0.0, %v147
    %v149 = vpop.f32.mrf.mxu0
    %150 = vdwg.mxu0
    %v153 = vunpack.c.l.b16 %v77
    %v154 = vunpack.c.l.b16 %v78
    %v155 = vpack.c.b16 %v154, %v153
    %v160 = vunpack.c.l.b16 %v79
    %v161 = vunpack.c.l.b16 %v80
    %v162 = vunpack.c.l.b16 %v81
    %v163 = vunpack.c.l.b16 %v82
    %v164 = vpack.c.b16 %v161, %v160
    %v165 = vpack.c.b16 %v163, %v162
    %v169 = vsel %vm106, %v155, 0
    %171 = vmatprep.subr.bf16.mxu0 0
    %172 = vmatpush1.bf16.msra.mxu0 0
    %173 = vmatprep.subr.bf16.mxu0 0
    %174 = vmatpush1.bf16.msra.mxu0 0
    %175 = vmatprep.subr.bf16.mxu0 0
    %176 = vmatpush1.bf16.msra.mxu0 0
    %177 = vmatprep.subr.bf16.mxu0 0
    %178 = vmatpush1.bf16.msra.mxu0 0
    %179 = vmatprep.subr.bf16.mxu0 0
    %180 = vmatpush1.bf16.msra.mxu0 0
    %181 = vmatprep.subr.bf16.mxu0 0
    %182 = vmatpush1.bf16.msra.mxu0 0
    %183 = vmatprep.subr.bf16.mxu0 0
    %184 = vmatpush1.bf16.msra.mxu0 %v165
    %185 = vmatprep.subr.bf16.mxu0 0
    %186 = vmatpush1.bf16.msra.mxu0 %v164
    %187 = vmatprep.subr.bf16.mxu0 0
    %188 = vmatpush2.bf16.msra.mxu0 0
    %189 = vmatprep.subr.bf16.mxu0 0
    %190 = vmatpush2.bf16.msra.mxu0 0
    %191 = vmatprep.subr.bf16.mxu0 0
    %192 = vmatpush2.bf16.msra.mxu0 0
    %193 = vmatprep.subr.bf16.mxu0 0
    %194 = vmatpush2.bf16.msra.mxu0 0
    %195 = vmatprep.subr.bf16.mxu0 0
    %196 = vmatpush2.bf16.msra.mxu0 0
    %197 = vmatprep.subr.bf16.mxu0 0
    %198 = vmatpush2.bf16.msra.mxu0 0
    %199 = vmatprep.subr.bf16.mxu0 0
    %200 = vmatpush2.bf16.msra.mxu0 0
    %201 = vmatprep.subr.bf16.mxu0 0
    %202 = vmatpush2.bf16.msra.mxu0 0
    %203 = vmatprep.mubr.bf16.mxu0 0
    %204 = vmatmul.mubr.bf16.gmra.mxu0 %v169
    %v205 = vpop.f32.mrf.mxu0
    %v206 = vadd.f32 %v145, %v205
    %v207 = vpop.f32.mrf.mxu0
    %v208 = vpop.f32.mrf.mxu0
    %v209 = vadd.f32 %v148, %v208
    %v210 = vpop.f32.mrf.mxu0
    %211 = vdwg.mxu0
    %v212 = vld [vmem:[%s4] sm:$0x1]
    %v213 = vunpack.c.l.bf16 %v212
    %v214 = vlaneseq
    %v215 = vshrl.u32 %v214, 7
    %v216 = vsub.s32 0, %v215
    %v217 = vrot.slane %v213, %v216
    %v218 = vadd.f32 %v206, %v217
    %v219 = vadd.f32 %v209, %v217
    %v220 = vpack.c.bf16 %v219, %v218
    %v222 = vunpack.c.l.b16 %v220
    %v223 = vunpack.c.h.b16 %v220
    %v224 = vpack.c.b16 %v222, %v222
    %v225 = vpack.c.b16 %v223, %v223
    %vm228 = vcmask 257024
    %229 = vst.msk [vmem:[#allocation10] sm:$0xf] %vm228, %v224
    %230 = vst.msk [vmem:[#allocation10 + $0x4] sm:$0xf] %vm228, %v225
    // Predicated region
    $region38: #{tpu_custom_call.1} parent=1 // pred_check
      _
    $region39: #{tpu_custom_call.1} parent=1 // pred_check_branch
      %232 = sbr.rel (0) target = $region41
    $region40: #{tpu_custom_call.1} parent=1 // pred_region
      %s234 = ssub.s32 128, 128
      %235 = vsyncadd [#allocation4], %s234
      %s236 = sshll.u32 [#allocation10], 4
      %s237 = int_to_ptr.vmem [resolvable:$true] %s236
      %242 = dma.vmem_to_hbm [thread:$0]  %s237, 128, %s5, [#allocation4], 64, 64, 4
    $region41: #{tpu_custom_call.1} parent=1 // pred_fallthru
      _
    // Predicated region
    $region42: #{tpu_custom_call.1} parent=1 // pred_check
      _
    $region43: #{tpu_custom_call.1} parent=1 // pred_check_branch
      %244 = sbr.rel (0) target = $region45
    $region44: #{tpu_custom_call.1} parent=1 // pred_region
      %245 = dma.done [#allocation4], 128
    $region45: #{tpu_custom_call.1} parent=1 // pred_fallthru
      _
    %246 = vsyncpa [#allocation3], 1
    %247 = vsyncpa [#allocation6], 1
    %248 = vsyncpa [#allocation9], 1
    %249 = vsyncpa [#allocation4], 1

</llo_original>
